<compile_context>
chip_gen: v6e
topology: v6e:2x2x1
jax: 0.10.0
libtpu: 0.0.40
codegen_flags: <defaults>
</compile_context>

<pallas_src>
import functools

import jax
import jax.numpy as jnp
from jax import lax
from jax.experimental import pallas as pl
from jax.experimental.pallas import tpu as pltpu


def _sublayer_kernel(*refs, apply_dropout, inv_keep_prob, feature_dim):
    if apply_dropout:
        x_ref, h_ref, m_ref, gain_ref, off_ref, o_ref = refs
    else:
        x_ref, h_ref, gain_ref, off_ref, o_ref = refs

    x = x_ref[...]                       # (Tm, D) f32
    h = h_ref[...]                       # (Tm, D) f32  == horse(x)

    if apply_dropout:
        # Inverted dropout: mask in {0,1}, scale kept units by 1/(1-p).
        h = h * (m_ref[...] * jnp.float32(inv_keep_prob))

    y = x + h                                            # residual add

    # LayerNorm over the feature dim: unbiased std (ddof=1), no epsilon,
    # exactly like the PyTorch module (torch.std default is unbiased).
    mean = jnp.sum(y, axis=-1, keepdims=True) * jnp.float32(1.0 / feature_dim)
    diff = y - mean
    var = jnp.sum(diff * diff, axis=-1, keepdims=True) * jnp.float32(
        1.0 / (feature_dim - 1))
    inv_std = lax.rsqrt(var)                             # EUP slot, ~free

    o_ref[...] = (gain_ref[...] * diff * inv_std + off_ref[...]).astype(o_ref.dtype)


def sublayer_forward(x, horse_out, gain, offset, *,
                     dropout_p=0.0, training=False, rng_key=None,
                     row_block=1024):
    """x, horse_out: (B, L, D) float32; gain/offset: (D,) float32.

    Returns LayerNorm(x + dropout(horse_out)) with shape (B, L, D).
    """
    B, L, D = x.shape
    rows = B * L

    x2 = x.reshape(rows, D).astype(jnp.float32)
    h2 = horse_out.reshape(rows, D).astype(jnp.float32)
    gain2 = gain.reshape(1, D).astype(jnp.float32)
    off2 = offset.reshape(1, D).astype(jnp.float32)

    # Flatten batch*seq into one big row axis and take fat row tiles per grid
    # step (multiple of 8 sublanes).  Pad rows if needed; padded rows are
    # computed (garbage) and sliced off afterwards.
    tm = min(row_block, max(rows, 8))
    tm = ((tm + 7) // 8) * 8
    rows_padded = ((rows + tm - 1) // tm) * tm
    if rows_padded != rows:
        pad = rows_padded - rows
        x2 = jnp.pad(x2, ((0, pad), (0, 0)))
        h2 = jnp.pad(h2, ((0, pad), (0, 0)))

    grid = (rows_padded // tm,)

    apply_dropout = bool(training) and dropout_p > 0.0
    inv_keep_prob = 1.0 / (1.0 - dropout_p) if apply_dropout else 1.0

    kernel = functools.partial(
        _sublayer_kernel,
        apply_dropout=apply_dropout,
        inv_keep_prob=inv_keep_prob,
        feature_dim=D,
    )

    row_spec = pl.BlockSpec((tm, D), lambda i: (i, 0))
    vec_spec = pl.BlockSpec((1, D), lambda i: (0, 0))

    args = [x2, h2]
    in_specs = [row_spec, row_spec]
    n_streams = 3  # x, h, out
    if apply_dropout:
        # TODO(synk): nn.Dropout's torch RNG stream has no in-kernel equivalent
        # that lowers everywhere; the Bernoulli mask is drawn with jax.random
        # here and applied (scaled) inside the kernel.
        if rng_key is None:
            rng_key = jax.random.PRNGKey(0)
        mask = jax.random.bernoulli(
            rng_key, p=1.0 - dropout_p, shape=(rows_padded, D)
        ).astype(jnp.float32)
        args.append(mask)
        in_specs.append(row_spec)
        n_streams = 4
    args += [gain2, off2]
    in_specs += [vec_spec, vec_spec]

    cost = pl.CostEstimate(
        flops=9 * rows_padded * D,                 # add + mask + mean + var + normalize
        transcendentals=rows_padded,               # one rsqrt per row
        bytes_accessed=(n_streams * rows_padded * D + 2 * D) * 4,
    )

    out = pl.pallas_call(
        kernel,
        out_shape=jax.ShapeDtypeStruct((rows_padded, D), jnp.float32),
        grid=grid,
        in_specs=in_specs,
        out_specs=row_spec,
        compiler_params=pltpu.CompilerParams(
            dimension_semantics=("parallel",)),
        cost_estimate=cost,
    )(*args)

    return out[:rows].reshape(B, L, D)


def _reference(x, horse_out, gain, offset):
    # Eval-mode reference (dropout = identity), matching the PyTorch module.
    y = x + horse_out
    mean = jnp.mean(y, axis=2, keepdims=True)
    std = jnp.std(y, axis=2, keepdims=True, ddof=1)   # torch.std is unbiased
    return gain[None, None, :] * (y - mean) / std + offset[None, None, :]


if __name__ == "__main__":
    key = jax.random.PRNGKey(0)
    B, L, D = 2, 8, 32                     # batch, seq, model_dim

    ks = jax.random.split(key, 6)
    x = jax.random.normal(ks[0], (B, L, D), jnp.float32)

    # TODO(synk): `horse` is an arbitrary nn.Module argument of Sublayer; it is
    # evaluated outside the kernel (simple tanh-linear stand-in here).
    w_h = jax.random.normal(ks[1], (D, D), jnp.float32) * 0.1
    b_h = jax.random.normal(ks[2], (D,), jnp.float32) * 0.1
    horse_out = jnp.tanh(x @ w_h + b_h)

    gain = 1.0 + 0.1 * jax.random.normal(ks[3], (D,), jnp.float32)
    offset = 0.1 * jax.random.normal(ks[4], (D,), jnp.float32)

    # Eval mode (dropout = identity): must match the reference.
    out = sublayer_forward(x, horse_out, gain, offset,
                           dropout_p=0.1, training=False)
    out = jax.block_until_ready(out)
    ref = _reference(x, horse_out, gain, offset)
    assert out.shape == (B, L, D)
    assert jnp.allclose(out, ref, atol=1e-4, rtol=1e-4)

    # Train mode: exercise the fused dropout-mask path (shape/finiteness
    # sanity; randomness differs from torch's RNG by construction).
    out_train = sublayer_forward(x, horse_out, gain, offset,
                                 dropout_p=0.5, training=True, rng_key=ks[5])
    out_train = jax.block_until_ready(out_train)
    assert out_train.shape == (B, L, D)
    assert bool(jnp.all(jnp.isfinite(out_train)))

    print("KERNEL_OK")
</pallas_src>

<mosaic_0001>
module attributes {stable_mosaic.version = 11 : i64} {
  func.func @_sublayer_kernel(%arg0: i32, %arg1: memref<16x32xf32, #tpu.memory_space<vmem>>, %arg2: memref<16x32xf32, #tpu.memory_space<vmem>>, %arg3: memref<1x32xf32, #tpu.memory_space<vmem>>, %arg4: memref<1x32xf32, #tpu.memory_space<vmem>>, %arg5: memref<16x32xf32, #tpu.memory_space<vmem>>) attributes {dimension_semantics = [#tpu.dimension_semantics<parallel>], iteration_bounds = array<i64: 1>, scalar_prefetch = 0 : i64, scratch_operands = 0 : i64, tpu.core_type = #tpu.core_type<tc>, window_params = [{transform_indices = @transform_0, window_bounds = array<i64: 16, 32>}, {transform_indices = @transform_1, window_bounds = array<i64: 16, 32>}, {pipeline_mode = #tpu.pipeline_mode<synchronous>, transform_indices = @transform_2, window_bounds = array<i64: 1, 32>}, {pipeline_mode = #tpu.pipeline_mode<synchronous>, transform_indices = @transform_3, window_bounds = array<i64: 1, 32>}, {transform_indices = @transform_4, window_bounds = array<i64: 16, 32>}]} {
    %c0 = arith.constant 0 : index
    %c0_0 = arith.constant 0 : index
    %0 = vector.load %arg1[%c0, %c0_0] : memref<16x32xf32, #tpu.memory_space<vmem>>, vector<16x32xf32>
    %c0_1 = arith.constant 0 : index
    %c0_2 = arith.constant 0 : index
    %1 = vector.load %arg2[%c0_1, %c0_2] : memref<16x32xf32, #tpu.memory_space<vmem>>, vector<16x32xf32>
    %2 = arith.addf %0, %1 : vector<16x32xf32>
    %cst = arith.constant dense<0.000000e+00> : vector<16xf32>
    %3 = vector.multi_reduction <add>, %2, %cst [1] : vector<16x32xf32> to vector<16xf32>
    %4 = vector.shape_cast %3 : vector<16xf32> to vector<16x1xf32>
    %cst_3 = arith.constant 3.125000e-02 : f32
    %5 = vector.broadcast %cst_3 : f32 to vector<16x1xf32>
    %6 = arith.mulf %4, %5 : vector<16x1xf32>
    %7 = vector.broadcast %6 : vector<16x1xf32> to vector<16x32xf32>
    %8 = arith.subf %2, %7 : vector<16x32xf32>
    %9 = arith.mulf %8, %8 : vector<16x32xf32>
    %cst_4 = arith.constant dense<0.000000e+00> : vector<16xf32>
    %10 = vector.multi_reduction <add>, %9, %cst_4 [1] : vector<16x32xf32> to vector<16xf32>
    %11 = vector.shape_cast %10 : vector<16xf32> to vector<16x1xf32>
    %cst_5 = arith.constant 0.0322580636 : f32
    %12 = vector.broadcast %cst_5 : f32 to vector<16x1xf32>
    %13 = arith.mulf %11, %12 : vector<16x1xf32>
    %14 = math.rsqrt %13 : vector<16x1xf32>
    %c0_6 = arith.constant 0 : index
    %c0_7 = arith.constant 0 : index
    %15 = vector.load %arg3[%c0_6, %c0_7] : memref<1x32xf32, #tpu.memory_space<vmem>>, vector<1x32xf32>
    %16 = vector.broadcast %15 : vector<1x32xf32> to vector<16x32xf32>
    %17 = arith.mulf %16, %8 : vector<16x32xf32>
    %18 = vector.broadcast %14 : vector<16x1xf32> to vector<16x32xf32>
    %19 = arith.mulf %17, %18 : vector<16x32xf32>
    %c0_8 = arith.constant 0 : index
    %c0_9 = arith.constant 0 : index
    %20 = vector.load %arg4[%c0_8, %c0_9] : memref<1x32xf32, #tpu.memory_space<vmem>>, vector<1x32xf32>
    %21 = vector.broadcast %20 : vector<1x32xf32> to vector<16x32xf32>
    %22 = arith.addf %19, %21 : vector<16x32xf32>
    %c0_10 = arith.constant 0 : index
    %c0_11 = arith.constant 0 : index
    %23 = vector.load %arg5[%c0_10, %c0_11] : memref<16x32xf32, #tpu.memory_space<vmem>>, vector<16x32xf32>
    tpu.vector_store %arg5[%c0_10, %c0_11], %22 {strides = array<i32>} : memref<16x32xf32, #tpu.memory_space<vmem>>, vector<16x32xf32>,
    return
  }
  func.func @transform_0(%arg0: i32) -> (i32, i32) {
    %c0_i32 = arith.constant 0 : i32
    %c0_i32_0 = arith.constant 0 : i32
    return %arg0, %c0_i32 : i32, i32
  }
  func.func @transform_1(%arg0: i32) -> (i32, i32) {
    %c0_i32 = arith.constant 0 : i32
    %c0_i32_0 = arith.constant 0 : i32
    return %arg0, %c0_i32 : i32, i32
  }
  func.func @transform_2(%arg0: i32) -> (i32, i32) {
    %c0_i32 = arith.constant 0 : i32
    %c0_i32_0 = arith.constant 0 : i32
    %c0_i32_1 = arith.constant 0 : i32
    return %c0_i32, %c0_i32_0 : i32, i32
  }
  func.func @transform_3(%arg0: i32) -> (i32, i32) {
    %c0_i32 = arith.constant 0 : i32
    %c0_i32_0 = arith.constant 0 : i32
    %c0_i32_1 = arith.constant 0 : i32
    return %c0_i32, %c0_i32_0 : i32, i32
  }
  func.func @transform_4(%arg0: i32) -> (i32, i32) {
    %c0_i32 = arith.constant 0 : i32
    %c0_i32_0 = arith.constant 0 : i32
    return %arg0, %c0_i32 : i32, i32
  }
}

</mosaic_0001>

<llo_original>
// kernel: tpu_custom_call.1
$region0: #{tpu_custom_call.1}
  #allocation0 [shape = 'u32[]', space=smem, size = 0x4, offset = 0x4, fixed_abs, tag = 'smem constant byte address 0x4 - core index']
  #allocation1 [shape = 'u32[144,128]{1,0:T(1,128)}', space=vmem, size = 0x12000, scoped, tag = 'internal scratch']
  %s0 = inlined_call_operand.hbm [shape: f32[16,32], index: 0, kind: input, shape index: {}]
  %s1 = inlined_call_operand.hbm [shape: f32[16,32], index: 1, kind: input, shape index: {}]
  %s2 = inlined_call_operand.vmem [shape: f32[1,32], index: 2, kind: input, shape index: {}]
  %s3 = inlined_call_operand.vmem [shape: f32[1,32], index: 3, kind: input, shape index: {}]
  %s4 = inlined_call_operand.hbm [shape: f32[16,32], index: 4, kind: output, shape index: {}]
  %s5 = sld [smem:[#allocation0]]
  $region34: #{tpu_custom_call.1} parent=0
    _
  %s7 = ssub.s32 1, %s5
  %s8 = scalar_select 0, %s7, %s5
  $region1: #{tpu_custom_call.1} parent=0
    #allocation2 [shape = 'u8[8192]{0}', space=vmem, size = 0x2000, scoped, tag = 'input window, operand 0, single buffered']
    #allocation3 [shape = 's32[1]{0}', space=sflag, size = 0x4, scoped, tag = 'scoped memory for tpu_custom_call.1']
    #allocation4 [shape = 's32[1]{0}', space=sflag, size = 0x4, scoped, tag = 'scoped memory for tpu_custom_call.1']
    #allocation5 [shape = 'u8[8192]{0}', space=vmem, size = 0x2000, scoped, tag = 'input window, operand 1, single buffered']
    #allocation6 [shape = 's32[1]{0}', space=sflag, size = 0x4, scoped, tag = 'scoped memory for tpu_custom_call.1']
    #allocation7 [shape = 'u8[8192]{0}', space=vmem, size = 0x2000, scoped, tag = 'output window, operand 0, single buffered']
    %9 = vsyncpa [#allocation3], 0
    %10 = vsyncpa [#allocation6], 0
    %11 = vsyncpa [#allocation4], 0
    // Predicated region
    $region2: #{tpu_custom_call.1} parent=1 // pred_check
      _
    $region3: #{tpu_custom_call.1} parent=1 // pred_check_branch
      %13 = sbr.rel (0) target = $region5
    $region4: #{tpu_custom_call.1} parent=1 // pred_region
      %s15 = ssub.s32 256, 256
      %16 = vsyncadd [#allocation3], %s15
      %s17 = sshll.u32 [#allocation2], 4
      %s18 = int_to_ptr.vmem [resolvable:$true] %s17
      %23 = dma.hbm_to_vmem [thread:$0]  %s0, 256, %s18, [#allocation3], 128, 128, 8
    $region5: #{tpu_custom_call.1} parent=1 // pred_fallthru
      _
    // Predicated region
    $region6: #{tpu_custom_call.1} parent=1 // pred_check
      _
    $region7: #{tpu_custom_call.1} parent=1 // pred_check_branch
      %25 = sbr.rel (0) target = $region9
    $region8: #{tpu_custom_call.1} parent=1 // pred_region
      %s27 = ssub.s32 256, 256
      %28 = vsyncadd [#allocation6], %s27
      %s29 = sshll.u32 [#allocation5], 4
      %s30 = int_to_ptr.vmem [resolvable:$true] %s29
      %35 = dma.hbm_to_vmem [thread:$0]  %s1, 256, %s30, [#allocation6], 128, 128, 8
    $region9: #{tpu_custom_call.1} parent=1 // pred_fallthru
      _
    // Predicated region
    $region10: #{tpu_custom_call.1} parent=1 // pred_check
      _
    $region11: #{tpu_custom_call.1} parent=1 // pred_check_branch
      %37 = sbr.rel (0) target = $region13
    $region12: #{tpu_custom_call.1} parent=1 // pred_region
      _
    $region13: #{tpu_custom_call.1} parent=1 // pred_fallthru
      _
    // Predicated region
    $region14: #{tpu_custom_call.1} parent=1 // pred_check
      _
    $region15: #{tpu_custom_call.1} parent=1 // pred_check_branch
      %39 = sbr.rel (0) target = $region17
    $region16: #{tpu_custom_call.1} parent=1 // pred_region
      _
    $region17: #{tpu_custom_call.1} parent=1 // pred_fallthru
      _
    // Predicated region
    $region18: #{tpu_custom_call.1} parent=1 // pred_check
      _
    $region19: #{tpu_custom_call.1} parent=1 // pred_check_branch
      %41 = sbr.rel (0) target = $region21
    $region20: #{tpu_custom_call.1} parent=1 // pred_region
      %42 = dma.done [#allocation3], 256
    $region21: #{tpu_custom_call.1} parent=1 // pred_fallthru
      _
    // Predicated region
    $region22: #{tpu_custom_call.1} parent=1 // pred_check
      _
    $region23: #{tpu_custom_call.1} parent=1 // pred_check_branch
      %44 = sbr.rel (0) target = $region25
    $region24: #{tpu_custom_call.1} parent=1 // pred_region
      %45 = dma.done [#allocation6], 256
    $region25: #{tpu_custom_call.1} parent=1 // pred_fallthru
      _
    %v46 = vld [vmem:[#allocation2] sm:$0xff]
    %v47 = vld [vmem:[#allocation2 + $0x8] sm:$0xff]
    %v48 = vld [vmem:[#allocation5] sm:$0xff]
    %v49 = vld [vmem:[#allocation5 + $0x8] sm:$0xff]
    %v50 = vadd.f32 %v46, %v48
    %v51 = vadd.f32 %v47, %v49
    %vm52 = vcmask 261120
    %v53 = vsel %vm52, %v50, 0.0
    %54 = vadd.xlane.f32.xlu0 %v53
    %v55 = vpop.xlane.xlu0 %54
    %v56 = vsel %vm52, %v51, 0.0
    %57 = vadd.xlane.f32.xlu0 %v56
    %v58 = vpop.xlane.xlu0 %57
    %v59 = vmul.f32 %v55, 0.03125
    %v60 = vmul.f32 %v58, 0.03125
    %v61 = vsub.f32 %v50, %v59
    %v62 = vsub.f32 %v51, %v60
    %v63 = vmul.f32 %v61, %v61
    %v64 = vmul.f32 %v62, %v62
    %v65 = vsel %vm52, %v63, 0.0
    %66 = vadd.xlane.f32.xlu0 %v65
    %v67 = vpop.xlane.xlu0 %66
    %v68 = vsel %vm52, %v64, 0.0
    %69 = vadd.xlane.f32.xlu0 %v68
    %v70 = vpop.xlane.xlu0 %69
    %v71 = vmul.f32 %v67, 0.032258064
    %v72 = vmul.f32 %v70, 0.032258064
    %v73 = vrsqrt.pop %v71
    %v74 = vrsqrt.pop %v72
    %v75 = vld [vmem:[%s2] sm:$0x1]
    %v77 = vlaneseq
    %v78 = vshrl.u32 %v77, 7
    %v79 = vsub.s32 0, %v78
    %v80 = vrot.slane %v75, %v79
    %v82 = vmul.f32 %v80, %v61
    %v83 = vmul.f32 %v80, %v62
    %v84 = vmul.f32 %v82, %v73
    %v85 = vmul.f32 %v83, %v74
    %v86 = vld [vmem:[%s3] sm:$0x1]
    %v88 = vlaneseq
    %v89 = vshrl.u32 %v88, 7
    %v90 = vsub.s32 0, %v89
    %v91 = vrot.slane %v86, %v90
    %v93 = vadd.f32 %v84, %v91
    %v94 = vadd.f32 %v85, %v91
    %95 = vst.msk [vmem:[#allocation7] sm:$0xff] %vm52, %v93
    %96 = vst.msk [vmem:[#allocation7 + $0x8] sm:$0xff] %vm52, %v94
    // Predicated region
    $region26: #{tpu_custom_call.1} parent=1 // pred_check
      _
    $region27: #{tpu_custom_call.1} parent=1 // pred_check_branch
      %98 = sbr.rel (0) target = $region29
    $region28: #{tpu_custom_call.1} parent=1 // pred_region
      %s100 = ssub.s32 256, 256
      %101 = vsyncadd [#allocation4], %s100
      %s102 = sshll.u32 [#allocation7], 4
      %s103 = int_to_ptr.vmem [resolvable:$true] %s102
      %108 = dma.vmem_to_hbm [thread:$0]  %s103, 256, %s4, [#allocation4], 128, 128, 8
    $region29: #{tpu_custom_call.1} parent=1 // pred_fallthru
      _
    // Predicated region
    $region30: #{tpu_custom_call.1} parent=1 // pred_check
      _
    $region31: #{tpu_custom_call.1} parent=1 // pred_check_branch
      %110 = sbr.rel (0) target = $region33
    $region32: #{tpu_custom_call.1} parent=1 // pred_region
      %111 = dma.done [#allocation4], 256
    $region33: #{tpu_custom_call.1} parent=1 // pred_fallthru
      _
    %112 = vsyncpa [#allocation3], 1
    %113 = vsyncpa [#allocation6], 1
    %114 = vsyncpa [#allocation4], 1

</llo_original>
